<compile_context>
chip_gen: v7x
topology: tpu7x:2x2x1
jax: 0.10.0
libtpu: 0.0.40
codegen_flags: <defaults>
</compile_context>

<pallas_src>
import functools
import math

import jax
import jax.numpy as jnp
from jax.experimental import pallas as pl
from jax.experimental.pallas import tpu as pltpu


# ----------------------------------------------------------------------------
# Tiling helper
# ----------------------------------------------------------------------------
def _pick_tile(dim, cap, align):
    """Largest multiple of `align` <= cap that evenly divides `dim`, else `dim`.

    Returning `dim` (the full axis) is always legal w.r.t. the (8,128) block
    constraint; an `align`-multiple divisor is legal and lane/sublane dense.
    """
    if dim <= cap:
        return dim
    t = (cap // align) * align
    while t >= align:
        if dim % t == 0:
            return t
        t -= align
    return dim


# ----------------------------------------------------------------------------
# Kernel 1: tiled matmul + bias (+ optional ReLU, + optional dropout mask)
# ----------------------------------------------------------------------------
def _linear_kernel(*refs, relu, has_mask):
    if has_mask:
        x_ref, w_ref, b_ref, m_ref, o_ref, acc_ref = refs
    else:
        x_ref, w_ref, b_ref, o_ref, acc_ref = refs
        m_ref = None

    k = pl.program_id(2)

    @pl.when(k == 0)
    def _init():
        acc_ref[...] = jnp.zeros_like(acc_ref)

    acc_ref[...] += jnp.dot(
        x_ref[...].astype(jnp.float32),
        w_ref[...].astype(jnp.float32),
        preferred_element_type=jnp.float32,
    )

    @pl.when(k == pl.num_programs(2) - 1)
    def _finish():
        y = acc_ref[...] + b_ref[...].astype(jnp.float32)  # (1, tn) broadcasts
        if relu:
            y = jnp.maximum(y, 0.0)
        if has_mask:
            y = y * m_ref[...].astype(jnp.float32)
        o_ref[...] = y.astype(o_ref.dtype)


def bayesian_linear_matmul(x, w, b, *, relu=False, drop_mask=None,
                           tm_cap=256, tn_cap=256, tk_cap=512):
    """y = [relu](x @ w + b) [* drop_mask].  x: [M,K], w: [K,N], b: [N]."""
    M, K = x.shape
    K2, N = w.shape
    assert K == K2
    tm = _pick_tile(M, tm_cap, 8)
    tn = _pick_tile(N, tn_cap, 128)
    tk = _pick_tile(K, tk_cap, 128)
    grid = (M // tm, N // tn, K // tk)
    b2 = b.reshape(1, N)
    has_mask = drop_mask is not None

    in_specs = [
        pl.BlockSpec((tm, tk), lambda i, j, k: (i, k)),
        pl.BlockSpec((tk, tn), lambda i, j, k: (k, j)),
        pl.BlockSpec((1, tn), lambda i, j, k: (0, j)),
    ]
    args = [x, w, b2]
    if has_mask:
        in_specs.append(pl.BlockSpec((tm, tn), lambda i, j, k: (i, j)))
        args.append(drop_mask)

    kernel = functools.partial(_linear_kernel, relu=relu, has_mask=has_mask)
    return pl.pallas_call(
        kernel,
        out_shape=jax.ShapeDtypeStruct((M, N), x.dtype),
        grid_spec=pltpu.PrefetchScalarGridSpec(
            num_scalar_prefetch=0,
            grid=grid,
            in_specs=in_specs,
            out_specs=pl.BlockSpec((tm, tn), lambda i, j, k: (i, j)),
            scratch_shapes=[pltpu.VMEM((tm, tn), jnp.float32)],
        ),
        compiler_params=pltpu.CompilerParams(
            dimension_semantics=("parallel", "parallel", "arbitrary")),
    )(*args)


# ----------------------------------------------------------------------------
# Kernel 2: scaled dot-product attention core (per batch, head, q-tile)
# ----------------------------------------------------------------------------
def _attn_kernel(*refs, scale, has_mask):
    if has_mask:
        q_ref, k_ref, v_ref, dm_ref, o_ref = refs
    else:
        q_ref, k_ref, v_ref, o_ref = refs
        dm_ref = None

    q = q_ref[...].astype(jnp.float32)   # (tq, Dh)
    k = k_ref[...].astype(jnp.float32)   # (S,  Dh)
    v = v_ref[...].astype(jnp.float32)   # (S,  Dh)

    # scores = q @ k^T / sqrt(Dh)   (contract on Dh, no explicit transpose)
    s = jax.lax.dot_general(q, k, (((1,), (1,)), ((), ())),
                            preferred_element_type=jnp.float32) * scale
    # TODO(synk): optional src_mask (masked_fill(mask==0, -1e9)) not plumbed in;
    # only the default src_mask=None path is implemented.
    s = s - jnp.max(s, axis=-1, keepdims=True)
    p = jnp.exp(s)
    p = p / jnp.sum(p, axis=-1, keepdims=True)
    if has_mask:  # BayesianDropout on attention weights (precomputed scale mask)
        p = p * dm_ref[...].astype(jnp.float32)
    o = jnp.dot(p, v, preferred_element_type=jnp.float32)
    o_ref[...] = o.astype(o_ref.dtype)


def attention_core(q, k, v, *, drop_mask=None, tq_cap=512):
    """q,k,v: [B, H, S, Dh]; drop_mask (optional): [B, H, S, S] scale mask."""
    B, H, S, Dh = q.shape
    tq = _pick_tile(S, tq_cap, 8)
    scale = 1.0 / math.sqrt(Dh)
    has_mask = drop_mask is not None

    in_specs = [
        pl.BlockSpec((None, None, tq, Dh), lambda b, h, i: (b, h, i, 0)),
        pl.BlockSpec((None, None, S, Dh), lambda b, h, i: (b, h, 0, 0)),
        pl.BlockSpec((None, None, S, Dh), lambda b, h, i: (b, h, 0, 0)),
    ]
    args = [q, k, v]
    if has_mask:
        in_specs.append(
            pl.BlockSpec((None, None, tq, S), lambda b, h, i: (b, h, i, 0)))
        args.append(drop_mask)

    kernel = functools.partial(_attn_kernel, scale=scale, has_mask=has_mask)
    return pl.pallas_call(
        kernel,
        out_shape=jax.ShapeDtypeStruct((B, H, S, Dh), q.dtype),
        grid_spec=pltpu.PrefetchScalarGridSpec(
            num_scalar_prefetch=0,
            grid=(B, H, S // tq),
            in_specs=in_specs,
            out_specs=pl.BlockSpec((None, None, tq, Dh),
                                   lambda b, h, i: (b, h, i, 0)),
        ),
        compiler_params=pltpu.CompilerParams(
            dimension_semantics=("parallel", "parallel", "parallel")),
    )(*args)


# ----------------------------------------------------------------------------
# Kernel 3: fused residual add (+ optional dropout mask on delta) + LayerNorm
# ----------------------------------------------------------------------------
def _add_ln_kernel(*refs, eps, has_mask):
    if has_mask:
        x_ref, d_ref, m_ref, g_ref, b_ref, o_ref = refs
    else:
        x_ref, d_ref, g_ref, b_ref, o_ref = refs
        m_ref = None

    d = d_ref[...].astype(jnp.float32)
    if has_mask:
        d = d * m_ref[...].astype(jnp.float32)
    y = x_ref[...].astype(jnp.float32) + d
    mu = jnp.mean(y, axis=-1, keepdims=True)
    var = jnp.mean(jnp.square(y - mu), axis=-1, keepdims=True)
    yn = (y - mu) * jax.lax.rsqrt(var + eps)
    o_ref[...] = (yn * g_ref[...].astype(jnp.float32)
                  + b_ref[...].astype(jnp.float32)).astype(o_ref.dtype)


def add_layer_norm(x, delta, gamma, beta, *, drop_mask=None, eps=1e-5, tm_cap=256):
    """LayerNorm(x + [mask *] delta).  x, delta: [M, D]; gamma, beta: [D]."""
    M, D = x.shape
    tm = _pick_tile(M, tm_cap, 8)
    g2 = gamma.reshape(1, D)
    b2 = beta.reshape(1, D)
    has_mask = drop_mask is not None

    in_specs = [
        pl.BlockSpec((tm, D), lambda i: (i, 0)),
        pl.BlockSpec((tm, D), lambda i: (i, 0)),
    ]
    args = [x, delta]
    if has_mask:
        in_specs.append(pl.BlockSpec((tm, D), lambda i: (i, 0)))
        args.append(drop_mask)
    in_specs += [pl.BlockSpec((1, D), lambda i: (0, 0)),
                 pl.BlockSpec((1, D), lambda i: (0, 0))]
    args += [g2, b2]

    kernel = functools.partial(_add_ln_kernel, eps=eps, has_mask=has_mask)
    return pl.pallas_call(
        kernel,
        out_shape=jax.ShapeDtypeStruct((M, D), x.dtype),
        grid_spec=pltpu.PrefetchScalarGridSpec(
            num_scalar_prefetch=0,
            grid=(M // tm,),
            in_specs=in_specs,
            out_specs=pl.BlockSpec((tm, D), lambda i: (i, 0)),
        ),
        compiler_params=pltpu.CompilerParams(dimension_semantics=("parallel",)),
    )(*args)


# ----------------------------------------------------------------------------
# Bayesian parameter handling (plain JAX, like nn.Module parameter setup)
# ----------------------------------------------------------------------------
def _kl_gaussian(mu, sigma, prior_sigma):
    return jnp.sum(jnp.log(prior_sigma / sigma)
                   + (jnp.square(sigma) + jnp.square(mu)) / (2.0 * prior_sigma ** 2)
                   - 0.5)


def _sample_linear(params, name, key, sample, prior_sigma):
    w_mu, w_rho = params[f"{name}_w_mu"], params[f"{name}_w_rho"]
    b_mu, b_rho = params[f"{name}_b_mu"], params[f"{name}_b_rho"]
    w_sigma = jax.nn.softplus(w_rho)
    b_sigma = jax.nn.softplus(b_rho)
    if sample:
        kw, kb = jax.random.split(key)
        w = w_mu + w_sigma * jax.random.normal(kw, w_mu.shape, w_mu.dtype)
        b = b_mu + b_sigma * jax.random.normal(kb, b_mu.shape, b_mu.dtype)
    else:
        w, b = w_mu, b_mu
    kl = _kl_gaussian(w_mu, w_sigma, prior_sigma) + _kl_gaussian(b_mu, b_sigma, prior_sigma)
    return w, b, kl


def init_encoder_layer_params(key, d_model, nhead, dim_feedforward, dtype=jnp.float32):
    assert d_model % nhead == 0
    shapes = {"q": (d_model, d_model), "k": (d_model, d_model),
              "v": (d_model, d_model), "o": (d_model, d_model),
              "ff1": (d_model, dim_feedforward), "ff2": (dim_feedforward, d_model)}
    params = {}
    keys = jax.random.split(key, 2 * len(shapes))
    for idx, (name, (fan_in, fan_out)) in enumerate(shapes.items()):
        scale = 1.0 / math.sqrt(fan_in)
        params[f"{name}_w_mu"] = scale * jax.random.normal(keys[2 * idx], (fan_in, fan_out), dtype)
        params[f"{name}_w_rho"] = jnp.full((fan_in, fan_out), -5.0, dtype)
        params[f"{name}_b_mu"] = 0.02 * jax.random.normal(keys[2 * idx + 1], (fan_out,), dtype)
        params[f"{name}_b_rho"] = jnp.full((fan_out,), -5.0, dtype)
    params["ln1_g"] = jnp.ones((d_model,), dtype)
    params["ln1_b"] = jnp.zeros((d_model,), dtype)
    params["ln2_g"] = jnp.ones((d_model,), dtype)
    params["ln2_b"] = jnp.zeros((d_model,), dtype)
    return params


# ----------------------------------------------------------------------------
# Full encoder-layer forward (Pallas kernels for the hot path)
# ----------------------------------------------------------------------------
def bayesian_transformer_encoder_layer(src, params, *, num_heads, dim_feedforward,
                                       dropout_p=0.1, prior_sigma=0.1,
                                       sample=True, rng_key=None, eps=1e-5):
    B, S, D = src.shape
    H = num_heads
    Dh = D // H
    assert Dh * H == D

    if rng_key is None:
        rng_key = jax.random.PRNGKey(0)
    keys = jax.random.split(rng_key, 9)

    wq, bq, klq = _sample_linear(params, "q", keys[0], sample, prior_sigma)
    wk, bk, klk = _sample_linear(params, "k", keys[1], sample, prior_sigma)
    wv, bv, klv = _sample_linear(params, "v", keys[2], sample, prior_sigma)
    wo, bo, klo = _sample_linear(params, "o", keys[3], sample, prior_sigma)
    w1, b1, kl1 = _sample_linear(params, "ff1", keys[4], sample, prior_sigma)
    w2, b2, kl2 = _sample_linear(params, "ff2", keys[5], sample, prior_sigma)
    kl = klq + klk + klv + klo + kl1 + kl2

    x2 = src.reshape(B * S, D)

    # --- self attention ---
    q = bayesian_linear_matmul(x2, wq, bq)
    k = bayesian_linear_matmul(x2, wk, bk)
    v = bayesian_linear_matmul(x2, wv, bv)

    def to_heads(t):
        return t.reshape(B, S, H, Dh).transpose(0, 2, 1, 3)

    qh, kh, vh = to_heads(q), to_heads(k), to_heads(v)

    use_dropout = sample and dropout_p > 0.0
    attn_drop = mask1 = mask2 = None
    if use_dropout:
        keep = 1.0 - dropout_p
        def make_mask(mk, shape):
            return jax.random.bernoulli(mk, keep, shape).astype(src.dtype) / keep
        attn_drop = make_mask(keys[6], (B, H, S, S))
        mask1 = make_mask(keys[7], (B * S, D))
        mask2 = make_mask(keys[8], (B * S, dim_feedforward))

    ao = attention_core(qh, kh, vh, drop_mask=attn_drop)          # [B,H,S,Dh]
    ao = ao.transpose(0, 2, 1, 3).reshape(B * S, D)
    attn_out = bayesian_linear_matmul(ao, wo, bo)

    # src = norm1(src + dropout1(attn_out))
    src1 = add_layer_norm(x2, attn_out, params["ln1_g"], params["ln1_b"],
                          drop_mask=mask1, eps=eps)

    # --- feed forward ---
    ff = bayesian_linear_matmul(src1, w1, b1, relu=True, drop_mask=mask2)
    ff = bayesian_linear_matmul(ff, w2, b2)

    # src = norm2(src + ff)
    out = add_layer_norm(src1, ff, params["ln2_g"], params["ln2_b"], eps=eps)
    return out.reshape(B, S, D), kl


# ----------------------------------------------------------------------------
# Pure-JAX reference (sample=False path) for correctness checking
# ----------------------------------------------------------------------------
def reference_encoder_layer(src, params, *, num_heads, eps=1e-5):
    B, S, D = src.shape
    H = num_heads
    Dh = D // H
    hp = jax.lax.Precision.HIGHEST

    def lin(x, name):
        return jnp.dot(x, params[f"{name}_w_mu"], precision=hp) + params[f"{name}_b_mu"]

    def ln(x, g, b):
        mu = jnp.mean(x, axis=-1, keepdims=True)
        var = jnp.mean(jnp.square(x - mu), axis=-1, keepdims=True)
        return (x - mu) * jax.lax.rsqrt(var + eps) * g + b

    x2 = src.reshape(B * S, D)

    def to_heads(t):
        return t.reshape(B, S, H, Dh).transpose(0, 2, 1, 3)

    q, k, v = to_heads(lin(x2, "q")), to_heads(lin(x2, "k")), to_heads(lin(x2, "v"))
    s = jnp.einsum("bhqd,bhkd->bhqk", q, k, precision=hp) / math.sqrt(Dh)
    w = jax.nn.softmax(s, axis=-1)
    o = jnp.einsum("bhqk,bhkd->bhqd", w, v, precision=hp)
    o = o.transpose(0, 2, 1, 3).reshape(B * S, D)
    attn = lin(o, "o")
    src1 = ln(x2 + attn, params["ln1_g"], params["ln1_b"])
    ff = jnp.maximum(lin(src1, "ff1"), 0.0)
    ff = lin(ff, "ff2")
    out = ln(src1 + ff, params["ln2_g"], params["ln2_b"])
    return out.reshape(B, S, D)


if __name__ == "__main__":
    B, S, D, H, FF = 2, 8, 32, 4, 64
    p_drop = 0.1
    prior_sigma = 0.1

    root = jax.random.PRNGKey(0)
    k_src, k_par, k_mc = jax.random.split(root, 3)

    src = jax.random.normal(k_src, (B, S, D), dtype=jnp.float32)
    params = init_encoder_layer_params(k_par, D, H, FF)

    # Deterministic path (sample=False -> mean weights, no dropout): check vs reference.
    out_det, kl_det = bayesian_transformer_encoder_layer(
        src, params, num_heads=H, dim_feedforward=FF,
        dropout_p=p_drop, prior_sigma=prior_sigma, sample=False)
    out_det = jax.block_until_ready(out_det)
    ref = reference_encoder_layer(src, params, num_heads=H)
    assert out_det.shape == (B, S, D)
    assert bool(jnp.allclose(out_det, ref, atol=2e-4, rtol=2e-4)), "deterministic forward mismatch"
    assert bool(jnp.isfinite(kl_det)) and float(kl_det) > 0.0, "bad KL divergence"

    # Stochastic path (sample=True): exercises sampled weights + fused dropout-mask kernels.
    out_mc, kl_mc = bayesian_transformer_encoder_layer(
        src, params, num_heads=H, dim_feedforward=FF,
        dropout_p=p_drop, prior_sigma=prior_sigma, sample=True, rng_key=k_mc)
    out_mc = jax.block_until_ready(out_mc)
    assert out_mc.shape == (B, S, D)
    assert bool(jnp.all(jnp.isfinite(out_mc))), "non-finite values in sampled forward"
    assert bool(jnp.isfinite(kl_mc)), "non-finite KL in sampled forward"

    print("KERNEL_OK")
</pallas_src>

<mosaic_0001>
module attributes {stable_mosaic.version = 11 : i64} {
  func.func @_linear_kernel(%arg0: i32, %arg1: i32, %arg2: i32, %arg3: memref<16x32xf32, #tpu.memory_space<vmem>>, %arg4: memref<32x32xf32, #tpu.memory_space<vmem>>, %arg5: memref<1x32xf32, #tpu.memory_space<vmem>>, %arg6: memref<16x32xf32, #tpu.memory_space<vmem>>, %arg7: memref<16x32xf32, #tpu.memory_space<vmem>>) attributes {dimension_semantics = [#tpu.dimension_semantics<parallel>, #tpu.dimension_semantics<parallel>, #tpu.dimension_semantics<arbitrary>], iteration_bounds = array<i64: 1, 1, 1>, scalar_prefetch = 0 : i64, scratch_operands = 1 : i64, tpu.core_type = #tpu.core_type<tc>, window_params = [{transform_indices = @transform_0, window_bounds = array<i64: 16, 32>}, {transform_indices = @transform_1, window_bounds = array<i64: 32, 32>}, {transform_indices = @transform_2, window_bounds = array<i64: 1, 32>}, {transform_indices = @transform_3, window_bounds = array<i64: 16, 32>}]} {
    %c0_i32 = arith.constant 0 : i32
    %0 = arith.cmpi eq, %arg2, %c0_i32 : i32
    %1 = arith.extui %0 : i1 to i32
    %c0_i32_0 = arith.constant 0 : i32
    %2 = arith.cmpi ne, %1, %c0_i32_0 : i32
    scf.if %2 {
      %cst_10 = arith.constant 0.000000e+00 : f32
      %12 = vector.broadcast %cst_10 : f32 to vector<16x32xf32>
      %c0_11 = arith.constant 0 : index
      %c0_12 = arith.constant 0 : index
      %13 = vector.load %arg7[%c0_11, %c0_12] : memref<16x32xf32, #tpu.memory_space<vmem>>, vector<16x32xf32>
      tpu.vector_store %arg7[%c0_11, %c0_12], %12 {strides = array<i32>} : memref<16x32xf32, #tpu.memory_space<vmem>>, vector<16x32xf32>,
    } else {
    }
    %c0 = arith.constant 0 : index
    %c0_1 = arith.constant 0 : index
    %3 = vector.load %arg7[%c0, %c0_1] : memref<16x32xf32, #tpu.memory_space<vmem>>, vector<16x32xf32>
    %c0_2 = arith.constant 0 : index
    %c0_3 = arith.constant 0 : index
    %4 = vector.load %arg3[%c0_2, %c0_3] : memref<16x32xf32, #tpu.memory_space<vmem>>, vector<16x32xf32>
    %c0_4 = arith.constant 0 : index
    %c0_5 = arith.constant 0 : index
    %5 = vector.load %arg4[%c0_4, %c0_5] : memref<32x32xf32, #tpu.memory_space<vmem>>, vector<32x32xf32>
    %cst = arith.constant dense<0.000000e+00> : vector<16x32xf32>
    %6 = tpu.matmul %4, %5, %cst {dimension_numbers = #tpu.dot_dimension_numbers<[1], [0], [0], [1], [0, 0, 1, 1], [], []>} : vector<16x32xf32>, vector<32x32xf32>, vector<16x32xf32> -> vector<16x32xf32>
    %7 = arith.addf %3, %6 : vector<16x32xf32>
    %c0_6 = arith.constant 0 : index
    %c0_7 = arith.constant 0 : index
    %8 = vector.load %arg7[%c0_6, %c0_7] : memref<16x32xf32, #tpu.memory_space<vmem>>, vector<16x32xf32>
    tpu.vector_store %arg7[%c0_6, %c0_7], %7 {strides = array<i32>} : memref<16x32xf32, #tpu.memory_space<vmem>>, vector<16x32xf32>,
    %c0_i32_8 = arith.constant 0 : i32
    %9 = arith.cmpi eq, %arg2, %c0_i32_8 : i32
    %10 = arith.extui %9 : i1 to i32
    %c0_i32_9 = arith.constant 0 : i32
    %11 = arith.cmpi ne, %10, %c0_i32_9 : i32
    scf.if %11 {
      %c0_10 = arith.constant 0 : index
      %c0_11 = arith.constant 0 : index
      %12 = vector.load %arg7[%c0_10, %c0_11] : memref<16x32xf32, #tpu.memory_space<vmem>>, vector<16x32xf32>
      %c0_12 = arith.constant 0 : index
      %c0_13 = arith.constant 0 : index
      %13 = vector.load %arg5[%c0_12, %c0_13] : memref<1x32xf32, #tpu.memory_space<vmem>>, vector<1x32xf32>
      %14 = vector.broadcast %13 : vector<1x32xf32> to vector<16x32xf32>
      %15 = arith.addf %12, %14 : vector<16x32xf32>
      %c0_14 = arith.constant 0 : index
      %c0_15 = arith.constant 0 : index
      %16 = vector.load %arg6[%c0_14, %c0_15] : memref<16x32xf32, #tpu.memory_space<vmem>>, vector<16x32xf32>
      tpu.vector_store %arg6[%c0_14, %c0_15], %15 {strides = array<i32>} : memref<16x32xf32, #tpu.memory_space<vmem>>, vector<16x32xf32>,
    } else {
    }
    return
  }
  func.func @transform_0(%arg0: i32, %arg1: i32, %arg2: i32) -> (i32, i32) {
    %c0_i32 = arith.constant 0 : i32
    return %arg0, %arg2 : i32, i32
  }
  func.func @transform_1(%arg0: i32, %arg1: i32, %arg2: i32) -> (i32, i32) {
    %c0_i32 = arith.constant 0 : i32
    return %arg2, %arg1 : i32, i32
  }
  func.func @transform_2(%arg0: i32, %arg1: i32, %arg2: i32) -> (i32, i32) {
    %c0_i32 = arith.constant 0 : i32
    %c0_i32_0 = arith.constant 0 : i32
    return %c0_i32, %arg1 : i32, i32
  }
  func.func @transform_3(%arg0: i32, %arg1: i32, %arg2: i32) -> (i32, i32) {
    %c0_i32 = arith.constant 0 : i32
    return %arg0, %arg1 : i32, i32
  }
}

</mosaic_0001>

<llo_original>
// kernel: tpu_custom_call.1
$region0: #{tpu_custom_call.1}
  #allocation0 [shape = 'u32[]', space=smem, size = 0x4, offset = 0x4, fixed_abs, tag = 'smem constant byte address 0x4 - core index']
  #allocation1 [shape = 'u32[144,128]{1,0:T(1,128)}', space=vmem, size = 0x12000, scoped, tag = 'internal scratch']
  #allocation2 [shape = 'f32[16,32]{1,0:T(8,128)}', space=vmem, size = 0x2000, scoped, tag = 'scratch operand']
  %s0 = inlined_call_operand.hbm [shape: f32[16,32], index: 0, kind: input, shape index: {}]
  %s1 = inlined_call_operand.hbm [shape: f32[32,32], index: 1, kind: input, shape index: {}]
  %s2 = inlined_call_operand.vmem [shape: f32[1,32], index: 2, kind: input, shape index: {}]
  %s3 = inlined_call_operand.hbm [shape: f32[16,32], index: 3, kind: output, shape index: {}]
  %s4 = sld [smem:[#allocation0]]
  $region38: #{tpu_custom_call.1} parent=0
    _
  %s6 = ssub.s32 1, %s4
  %s7 = scalar_select 0, %s6, %s4
  $region1: #{tpu_custom_call.1} parent=0
    #allocation3 [shape = 'u8[8192]{0}', space=vmem, size = 0x2000, scoped, tag = 'input window, operand 0, single buffered']
    #allocation4 [shape = 's32[1]{0}', space=sflag, size = 0x4, scoped, tag = 'scoped memory for tpu_custom_call.1']
    #allocation5 [shape = 's32[1]{0}', space=sflag, size = 0x4, scoped, tag = 'scoped memory for tpu_custom_call.1']
    #allocation6 [shape = 'u8[16384]{0}', space=vmem, size = 0x4000, scoped, tag = 'input window, operand 1, single buffered']
    #allocation7 [shape = 's32[1]{0}', space=sflag, size = 0x4, scoped, tag = 'scoped memory for tpu_custom_call.1']
    #allocation8 [shape = 'u8[8192]{0}', space=vmem, size = 0x2000, scoped, tag = 'output window, operand 0, single buffered']
    %8 = vsyncpa [#allocation4], 0
    %9 = vsyncpa [#allocation7], 0
    %10 = vsyncpa [#allocation5], 0
    // Predicated region
    $region2: #{tpu_custom_call.1} parent=1 // pred_check
      _
    $region3: #{tpu_custom_call.1} parent=1 // pred_check_branch
      %12 = sbr.rel (0) target = $region5
    $region4: #{tpu_custom_call.1} parent=1 // pred_region
      %s14 = ssub.s32 256, 256
      %15 = vsyncadd [#allocation4], %s14
      %s16 = sshll.u32 [#allocation3], 4
      %s17 = int_to_ptr.vmem [resolvable:$true] %s16
      %22 = dma.hbm_to_vmem [thread:$0]  %s0, 256, %s17, [#allocation4], 128, 128, 8
    $region5: #{tpu_custom_call.1} parent=1 // pred_fallthru
      _
    // Predicated region
    $region6: #{tpu_custom_call.1} parent=1 // pred_check
      _
    $region7: #{tpu_custom_call.1} parent=1 // pred_check_branch
      %24 = sbr.rel (0) target = $region9
    $region8: #{tpu_custom_call.1} parent=1 // pred_region
      %s26 = ssub.s32 512, 512
      %27 = vsyncadd [#allocation7], %s26
      %s28 = sshll.u32 [#allocation6], 4
      %s29 = int_to_ptr.vmem [resolvable:$true] %s28
      %34 = dma.hbm_to_vmem [thread:$0]  %s1, 512, %s29, [#allocation7], 128, 128, 8
    $region9: #{tpu_custom_call.1} parent=1 // pred_fallthru
      _
    // Predicated region
    $region10: #{tpu_custom_call.1} parent=1 // pred_check
      _
    $region11: #{tpu_custom_call.1} parent=1 // pred_check_branch
      %36 = sbr.rel (0) target = $region13
    $region12: #{tpu_custom_call.1} parent=1 // pred_region
      _
    $region13: #{tpu_custom_call.1} parent=1 // pred_fallthru
      _
    // Predicated region
    $region14: #{tpu_custom_call.1} parent=1 // pred_check
      _
    $region15: #{tpu_custom_call.1} parent=1 // pred_check_branch
      %38 = sbr.rel (0) target = $region17
    $region16: #{tpu_custom_call.1} parent=1 // pred_region
      %39 = dma.done [#allocation4], 256
    $region17: #{tpu_custom_call.1} parent=1 // pred_fallthru
      _
    // Predicated region
    $region18: #{tpu_custom_call.1} parent=1 // pred_check
      _
    $region19: #{tpu_custom_call.1} parent=1 // pred_check_branch
      %41 = sbr.rel (0) target = $region21
    $region20: #{tpu_custom_call.1} parent=1 // pred_region
      %42 = dma.done [#allocation7], 512
    $region21: #{tpu_custom_call.1} parent=1 // pred_fallthru
      _
    %p43 = scmp.eq.s32.totalorder 0, 0
    // Predicated region
    $region22: #{tpu_custom_call.1} parent=1 // pred_check
      %p44 = pneg %p43
    $region23: #{tpu_custom_call.1} parent=1 // pred_check_branch
      %46 = sbr.rel (%p44) target = $region25
    $region24: #{tpu_custom_call.1} parent=1 // pred_region
      %vm47 = vcmask 261120
      %48 = vst.msk [vmem:[#allocation2] sm:$0xff] %vm47, 0.0
      %49 = vst.msk [vmem:[#allocation2 + $0x8] sm:$0xff] %vm47, 0.0
    $region25: #{tpu_custom_call.1} parent=1 // pred_fallthru
      _
    %v50 = vld [vmem:[#allocation2] sm:$0xff]
    %v51 = vld [vmem:[#allocation2 + $0x8] sm:$0xff]
    %v52 = vld [vmem:[#allocation3] sm:$0xff]
    %v53 = vld [vmem:[#allocation3 + $0x8] sm:$0xff]
    %v54 = vld [vmem:[#allocation6] sm:$0xff]
    %v55 = vld [vmem:[#allocation6 + $0x8] sm:$0xff]
    %v56 = vld [vmem:[#allocation6 + $0x10] sm:$0xff]
    %v57 = vld [vmem:[#allocation6 + $0x18] sm:$0xff]
    %vm58 = vcmask 261120
    %v60 = vsel %vm58, %v52, 0
    %v63 = vsel %vm58, %v53, 0
    %65 = vmatprep.subr.mxu0 0.0
    %66 = vmatpush1.msra.mxu0 %v54
    %67 = vmatprep.subr.mxu0 0.0
    %68 = vmatpush1.msra.mxu0 %v55
    %69 = vmatprep.subr.mxu0 0.0
    %70 = vmatpush1.msra.mxu0 %v56
    %71 = vmatprep.subr.mxu0 0.0
    %72 = vmatpush1.msra.mxu0 %v57
    %73 = vmatprep.subr.mxu0 0.0
    %74 = vmatpush1.msra.mxu0 0.0
    %75 = vmatprep.subr.mxu0 0.0
    %76 = vmatpush1.msra.mxu0 0.0
    %77 = vmatprep.subr.mxu0 0.0
    %78 = vmatpush1.msra.mxu0 0.0
    %79 = vmatprep.subr.mxu0 0.0
    %80 = vmatpush1.msra.mxu0 0.0
    %81 = vmatprep.subr.mxu0 0.0
    %82 = vmatpush1.msra.mxu0 0.0
    %83 = vmatprep.subr.mxu0 0.0
    %84 = vmatpush1.msra.mxu0 0.0
    %85 = vmatprep.subr.mxu0 0.0
    %86 = vmatpush1.msra.mxu0 0.0
    %87 = vmatprep.subr.mxu0 0.0
    %88 = vmatpush1.msra.mxu0 0.0
    %89 = vmatprep.subr.mxu0 0.0
    %90 = vmatpush1.msra.mxu0 0.0
    %91 = vmatprep.subr.mxu0 0.0
    %92 = vmatpush1.msra.mxu0 0.0
    %93 = vmatprep.subr.mxu0 0.0
    %94 = vmatpush1.msra.mxu0 0.0
    %95 = vmatprep.subr.mxu0 0.0
    %96 = vmatpush1.msra.mxu0 0.0
    %97 = vmatprep.subr.mxu0 0.0
    %98 = vmatpush1.msra.mxu0 0.0
    %99 = vmatprep.subr.mxu0 0.0
    %100 = vmatpush1.msra.mxu0 0.0
    %101 = vmatprep.subr.mxu0 0.0
    %102 = vmatpush1.msra.mxu0 0.0
    %103 = vmatprep.subr.mxu0 0.0
    %104 = vmatpush1.msra.mxu0 0.0
    %105 = vmatprep.subr.mxu0 0.0
    %106 = vmatpush1.msra.mxu0 0.0
    %107 = vmatprep.subr.mxu0 0.0
    %108 = vmatpush1.msra.mxu0 0.0
    %109 = vmatprep.subr.mxu0 0.0
    %110 = vmatpush1.msra.mxu0 0.0
    %111 = vmatprep.subr.mxu0 0.0
    %112 = vmatpush1.msra.mxu0 0.0
    %113 = vmatprep.subr.mxu0 0.0
    %114 = vmatpush1.msra.mxu0 0.0
    %115 = vmatprep.subr.mxu0 0.0
    %116 = vmatpush1.msra.mxu0 0.0
    %117 = vmatprep.subr.mxu0 0.0
    %118 = vmatpush1.msra.mxu0 0.0
    %119 = vmatprep.subr.mxu0 0.0
    %120 = vmatpush1.msra.mxu0 0.0
    %121 = vmatprep.subr.mxu0 0.0
    %122 = vmatpush1.msra.mxu0 0.0
    %123 = vmatprep.subr.mxu0 0.0
    %124 = vmatpush1.msra.mxu0 0.0
    %125 = vmatprep.subr.mxu0 0.0
    %126 = vmatpush1.msra.mxu0 0.0
    %127 = vmatprep.subr.mxu0 0.0
    %128 = vmatpush1.msra.mxu0 0.0
    %129 = vmatprep.mubr.f32.mxu0 0.0
    %130 = vmatmul.mubr.f32.gmra.mrb[0].mxu0 %v60
    %v131 = vpop.f32.mrb[0].mxu0
    %v132 = vadd.f32 0.0, %v131
    %v133 = vpop.f32.mrb[0].mxu0
    %134 = vmatprep.mubr.f32.mxu0 0.0
    %135 = vmatmul.mubr.f32.gmra.mrb[0].mxu0 %v63
    %v136 = vpop.f32.mrb[0].mxu0
    %v137 = vadd.f32 0.0, %v136
    %v138 = vpop.f32.mrb[0].mxu0
    %139 = vdwg.mxu0
    %v140 = vadd.f32 %v50, %v132
    %v141 = vadd.f32 %v51, %v137
    %142 = vst.msk [vmem:[#allocation2] sm:$0xff] %vm58, %v140
    %143 = vst.msk [vmem:[#allocation2 + $0x8] sm:$0xff] %vm58, %v141
    // Predicated region
    $region26: #{tpu_custom_call.1} parent=1 // pred_check
      %p144 = pneg %p43
    $region27: #{tpu_custom_call.1} parent=1 // pred_check_branch
      %146 = sbr.rel (%p144) target = $region29
    $region28: #{tpu_custom_call.1} parent=1 // pred_region
      %v147 = vld [vmem:[#allocation2] sm:$0xff]
      %v148 = vld [vmem:[#allocation2 + $0x8] sm:$0xff]
      %v149 = vld [vmem:[%s2] sm:$0x1]
      %v151 = vlaneseq
      %v152 = vshrl.u32 %v151, 7
      %v153 = vsub.s32 0, %v152
      %v154 = vrot.slane %v149, %v153
      %v156 = vadd.f32 %v147, %v154
      %v157 = vadd.f32 %v148, %v154
      %158 = vst.msk [vmem:[#allocation8] sm:$0xff] %vm58, %v156
      %159 = vst.msk [vmem:[#allocation8 + $0x8] sm:$0xff] %vm58, %v157
    $region29: #{tpu_custom_call.1} parent=1 // pred_fallthru
      _
    // Predicated region
    $region30: #{tpu_custom_call.1} parent=1 // pred_check
      _
    $region31: #{tpu_custom_call.1} parent=1 // pred_check_branch
      %161 = sbr.rel (0) target = $region33
    $region32: #{tpu_custom_call.1} parent=1 // pred_region
      %s163 = ssub.s32 256, 256
      %164 = vsyncadd [#allocation5], %s163
      %s165 = sshll.u32 [#allocation8], 4
      %s166 = int_to_ptr.vmem [resolvable:$true] %s165
      %171 = dma.vmem_to_hbm [thread:$0]  %s166, 256, %s3, [#allocation5], 128, 128, 8
    $region33: #{tpu_custom_call.1} parent=1 // pred_fallthru
      _
    // Predicated region
    $region34: #{tpu_custom_call.1} parent=1 // pred_check
      _
    $region35: #{tpu_custom_call.1} parent=1 // pred_check_branch
      %173 = sbr.rel (0) target = $region37
    $region36: #{tpu_custom_call.1} parent=1 // pred_region
      %174 = dma.done [#allocation5], 256
    $region37: #{tpu_custom_call.1} parent=1 // pred_fallthru
      _
    %175 = vsyncpa [#allocation4], 1
    %176 = vsyncpa [#allocation7], 1
    %177 = vsyncpa [#allocation5], 1

</llo_original>
